<compile_context>
chip_gen: v7x
topology: tpu7x:2x2x1
jax: 0.10.0
libtpu: 0.0.40
codegen_flags: <defaults>
</compile_context>

<pallas_src>
import jax
import jax.numpy as jnp
import numpy as np
from jax.experimental import pallas as pl
from jax.experimental.pallas import tpu as pltpu


def _softmax_residual_kernel(x_ref, o_ref):
    # x_ref/o_ref: (Bt, Ct, N) with the softmax axis N on lanes (full extent).
    x = x_ref[...].astype(jnp.float32)
    m = jnp.max(x, axis=-1, keepdims=True)            # cross-lane reduce (XLU)
    e = jnp.exp(x - m)                                # EUP
    denom = jnp.sum(e, axis=-1, keepdims=True)        # cross-lane reduce (XLU)
    inv2 = pl.reciprocal(2.0 * denom, approx=True)    # EUP; 0.5 folded into 1/(2*sum)
    # out = x + 0.5 * (e/denom) * x  ==  x * (1 + e * inv2)
    o_ref[...] = (x * (1.0 + e * inv2)).astype(o_ref.dtype)


def self_correlation(feat, *, block_bytes=4 << 20):
    """feat: (B, N, C).  Returns feat + 0.5 * softmax(feat, axis=1) * feat."""
    B, N, C = feat.shape

    # Lane-dense layout: put the softmax axis N on the 128-lane axis.
    x = jnp.transpose(feat, (0, 2, 1))                # (B, C, N)

    # Tile selection. N (reduction axis) always stays full-extent inside a
    # block so the in-block softmax is exact. Tile C first (keeping multiples
    # of 8 for the sublane axis), then pack batch elements per step while the
    # block stays inside the VMEM budget.
    elems_budget = max(1, block_bytes // feat.dtype.itemsize)
    ct = C
    while ct * N > elems_budget and ct % 16 == 0:
        ct //= 2
    bt = 1
    while bt < B and B % (2 * bt) == 0 and (2 * bt) * ct * N <= elems_budget:
        bt *= 2

    out_bcn = pl.pallas_call(
        _softmax_residual_kernel,
        out_shape=jax.ShapeDtypeStruct((B, C, N), feat.dtype),
        grid_spec=pltpu.PrefetchScalarGridSpec(
            num_scalar_prefetch=0,
            grid=(B // bt, C // ct),
            in_specs=[pl.BlockSpec((bt, ct, N), lambda b, c: (b, c, 0))],
            out_specs=pl.BlockSpec((bt, ct, N), lambda b, c: (b, c, 0)),
        ),
        compiler_params=pltpu.CompilerParams(
            dimension_semantics=("parallel", "parallel")),
    )(x)

    return jnp.transpose(out_bcn, (0, 2, 1))          # back to (B, N, C)


if __name__ == "__main__":
    key = jax.random.PRNGKey(0)
    B, N, C = 2, 8, 16
    feat = jax.random.normal(key, (B, N, C), dtype=jnp.float32)

    out = jax.block_until_ready(self_correlation(feat))

    # Pure-JAX reference of the returned tensor (matches the torch forward).
    ref = feat + 0.5 * jax.nn.softmax(feat, axis=1) * feat
    # Slightly loosened tolerance for the approx (EUP) reciprocal.
    np.testing.assert_allclose(np.asarray(out), np.asarray(ref),
                               rtol=1e-3, atol=1e-3)

    print("KERNEL_OK")
</pallas_src>

<mosaic_0001>
module attributes {stable_mosaic.version = 11 : i64} {
  func.func @_softmax_residual_kernel(%arg0: i32, %arg1: i32, %arg2: memref<2x16x8xf32, #tpu.memory_space<vmem>>, %arg3: memref<2x16x8xf32, #tpu.memory_space<vmem>>) attributes {dimension_semantics = [#tpu.dimension_semantics<parallel>, #tpu.dimension_semantics<parallel>], iteration_bounds = array<i64: 1, 1>, scalar_prefetch = 0 : i64, scratch_operands = 0 : i64, tpu.core_type = #tpu.core_type<tc>, window_params = [{transform_indices = @transform_0, window_bounds = array<i64: 2, 16, 8>}, {transform_indices = @transform_1, window_bounds = array<i64: 2, 16, 8>}]} {
    %c0 = arith.constant 0 : index
    %c0_0 = arith.constant 0 : index
    %c0_1 = arith.constant 0 : index
    %0 = vector.load %arg2[%c0, %c0_0, %c0_1] : memref<2x16x8xf32, #tpu.memory_space<vmem>>, vector<2x16x8xf32>
    %cst = arith.constant dense<0xFF800000> : vector<2x16xf32>
    %1 = vector.multi_reduction <maximumf>, %0, %cst [2] : vector<2x16x8xf32> to vector<2x16xf32>
    %2 = vector.shape_cast %1 : vector<2x16xf32> to vector<2x16x1xf32>
    %3 = vector.broadcast %2 : vector<2x16x1xf32> to vector<2x16x8xf32>
    %4 = arith.subf %0, %3 : vector<2x16x8xf32>
    %5 = math.exp %4 : vector<2x16x8xf32>
    %cst_2 = arith.constant dense<0.000000e+00> : vector<2x16xf32>
    %6 = vector.multi_reduction <add>, %5, %cst_2 [2] : vector<2x16x8xf32> to vector<2x16xf32>
    %7 = vector.shape_cast %6 : vector<2x16xf32> to vector<2x16x1xf32>
    %cst_3 = arith.constant 2.000000e+00 : f32
    %8 = vector.broadcast %cst_3 : f32 to vector<2x16x1xf32>
    %9 = arith.mulf %8, %7 : vector<2x16x1xf32>
    %10 = tpu.reciprocal %9 {approx = true} : vector<2x16x1xf32> -> vector<2x16x1xf32>
    %11 = vector.broadcast %10 : vector<2x16x1xf32> to vector<2x16x8xf32>
    %12 = arith.mulf %5, %11 : vector<2x16x8xf32>
    %cst_4 = arith.constant 1.000000e+00 : f32
    %13 = vector.broadcast %cst_4 : f32 to vector<2x16x8xf32>
    %14 = arith.addf %13, %12 : vector<2x16x8xf32>
    %15 = arith.mulf %0, %14 : vector<2x16x8xf32>
    %c0_5 = arith.constant 0 : index
    %c0_6 = arith.constant 0 : index
    %c0_7 = arith.constant 0 : index
    %16 = vector.load %arg3[%c0_5, %c0_6, %c0_7] : memref<2x16x8xf32, #tpu.memory_space<vmem>>, vector<2x16x8xf32>
    tpu.vector_store %arg3[%c0_5, %c0_6, %c0_7], %15 {strides = array<i32>} : memref<2x16x8xf32, #tpu.memory_space<vmem>>, vector<2x16x8xf32>,
    return
  }
  func.func @transform_0(%arg0: i32, %arg1: i32) -> (i32, i32, i32) {
    %c0_i32 = arith.constant 0 : i32
    %c0_i32_0 = arith.constant 0 : i32
    return %arg0, %arg1, %c0_i32 : i32, i32, i32
  }
  func.func @transform_1(%arg0: i32, %arg1: i32) -> (i32, i32, i32) {
    %c0_i32 = arith.constant 0 : i32
    %c0_i32_0 = arith.constant 0 : i32
    return %arg0, %arg1, %c0_i32 : i32, i32, i32
  }
}

</mosaic_0001>

<llo_original>
// kernel: tpu_custom_call.1
$region0: #{tpu_custom_call.1}
  #allocation0 [shape = 'u32[]', space=smem, size = 0x4, offset = 0x4, fixed_abs, tag = 'smem constant byte address 0x4 - core index']
  #allocation1 [shape = 'u32[144,128]{1,0:T(1,128)}', space=vmem, size = 0x12000, scoped, tag = 'internal scratch']
  %s0 = inlined_call_operand.vmem [shape: f32[2,16,8], index: 0, kind: input, shape index: {}]
  %s1 = inlined_call_operand.vmem [shape: f32[2,16,8], index: 1, kind: output, shape index: {}]
  %s2 = sld [smem:[#allocation0]]
  $region14: #{tpu_custom_call.1} parent=0
    _
  %s4 = ssub.s32 1, %s2
  %s5 = scalar_select 0, %s4, %s2
  // Predicated region
  $region2: #{tpu_custom_call.1} parent=0 // pred_check
    _
  $region3: #{tpu_custom_call.1} parent=0 // pred_check_branch
    %7 = sbr.rel (0) target = $region5
  $region4: #{tpu_custom_call.1} parent=0 // pred_region
    _
  $region5: #{tpu_custom_call.1} parent=0 // pred_fallthru
    _
  %v8 = vld [vmem:[%s0] sm:$0xff]
  %v9 = vld [vmem:[%s0 + $0x8] sm:$0xff]
  %v10 = vld [vmem:[%s0 + $0x10] sm:$0xff]
  %v11 = vld [vmem:[%s0 + $0x18] sm:$0xff]
  %vm12 = vcmask 64512
  %v13 = vsel %vm12, %v8, -inf
  %14 = vmax.xlane.f32.xlu0 %v13
  %v15 = vpop.xlane.xlu0 %14
  %v16 = vsel %vm12, %v9, -inf
  %17 = vmax.xlane.f32.xlu0 %v16
  %v18 = vpop.xlane.xlu0 %17
  %v19 = vsel %vm12, %v10, -inf
  %20 = vmax.xlane.f32.xlu0 %v19
  %v21 = vpop.xlane.xlu0 %20
  %v22 = vsel %vm12, %v11, -inf
  %23 = vmax.xlane.f32.xlu0 %v22
  %v24 = vpop.xlane.xlu0 %23
  %v25 = vsub.f32 %v8, %v15
  %v26 = vsub.f32 %v9, %v18
  %v27 = vsub.f32 %v10, %v21
  %v28 = vsub.f32 %v11, %v24
  %v29 = vmul.f32 %v25, 1.442695
  %v30 = vpow.pop %v29
  %v31 = vmul.f32 %v26, 1.442695
  %v32 = vpow.pop %v31
  %v33 = vmul.f32 %v27, 1.442695
  %v34 = vpow.pop %v33
  %v35 = vmul.f32 %v28, 1.442695
  %v36 = vpow.pop %v35
  %v37 = vsel %vm12, %v30, 0.0
  %38 = vadd.xlane.f32.xlu0 %v37
  %v39 = vpop.xlane.xlu0 %38
  %v40 = vsel %vm12, %v32, 0.0
  %41 = vadd.xlane.f32.xlu0 %v40
  %v42 = vpop.xlane.xlu0 %41
  %v43 = vsel %vm12, %v34, 0.0
  %44 = vadd.xlane.f32.xlu0 %v43
  %v45 = vpop.xlane.xlu0 %44
  %v46 = vsel %vm12, %v36, 0.0
  %47 = vadd.xlane.f32.xlu0 %v46
  %v48 = vpop.xlane.xlu0 %47
  %v49 = vmul.f32 %v39, 2.0
  %v50 = vmul.f32 %v42, 2.0
  %v51 = vmul.f32 %v45, 2.0
  %v52 = vmul.f32 %v48, 2.0
  %v53 = vrcp.pop %v49
  %v54 = vrcp.pop %v50
  %v55 = vrcp.pop %v51
  %v56 = vrcp.pop %v52
  %v57 = vmul.f32 %v30, %v53
  %v58 = vmul.f32 %v32, %v54
  %v59 = vmul.f32 %v34, %v55
  %v60 = vmul.f32 %v36, %v56
  %v61 = vadd.f32 %v57, 1.0
  %v62 = vadd.f32 %v58, 1.0
  %v63 = vadd.f32 %v59, 1.0
  %v64 = vadd.f32 %v60, 1.0
  %v65 = vmul.f32 %v8, %v61
  %v66 = vmul.f32 %v9, %v62
  %v67 = vmul.f32 %v10, %v63
  %v68 = vmul.f32 %v11, %v64
  %69 = vst.msk [vmem:[%s1] sm:$0xff] %vm12, %v65
  %70 = vst.msk [vmem:[%s1 + $0x8] sm:$0xff] %vm12, %v66
  %71 = vst.msk [vmem:[%s1 + $0x10] sm:$0xff] %vm12, %v67
  %72 = vst.msk [vmem:[%s1 + $0x18] sm:$0xff] %vm12, %v68
  // Predicated region
  $region6: #{tpu_custom_call.1} parent=0 // pred_check
    _
  $region7: #{tpu_custom_call.1} parent=0 // pred_check_branch
    %74 = sbr.rel (0) target = $region9
  $region8: #{tpu_custom_call.1} parent=0 // pred_region
    _
  $region9: #{tpu_custom_call.1} parent=0 // pred_fallthru
    _
  // Predicated region
  $region10: #{tpu_custom_call.1} parent=0 // pred_check
    _
  $region11: #{tpu_custom_call.1} parent=0 // pred_check_branch
    %76 = sbr.rel (0) target = $region13
  $region12: #{tpu_custom_call.1} parent=0 // pred_region
    _
  $region13: #{tpu_custom_call.1} parent=0 // pred_fallthru
    _

</llo_original>
